<compile_context>
chip_gen: v5e
topology: v5e:2x2
jax: 0.10.0
libtpu: 0.0.40
codegen_flags: <defaults>
</compile_context>

<pallas_src>
import jax
import jax.numpy as jnp
from jax.experimental import pallas as pl
from jax.experimental.pallas import tpu as pltpu


def _dma_copy_kernel(x_hbm, o_hbm, sem):
    # Single HBM->HBM DMA of the full array: no VMEM staging, no grid,
    # no per-step pipeline overhead.  Pure pass-through — the abstract
    # Encoder defines no transformation.
    cp = pltpu.make_async_copy(x_hbm, o_hbm, sem)
    cp.start()
    cp.wait()


def _materialize_copy(x):
    """Fresh output buffer holding a bit-exact copy of `x` via one HBM DMA."""
    nbytes = x.size * jnp.dtype(x.dtype).itemsize
    return pl.pallas_call(
        _dma_copy_kernel,
        out_shape=jax.ShapeDtypeStruct(x.shape, x.dtype),
        # Raw HBM refs on both sides — the kernel drives the copy itself.
        in_specs=[pl.BlockSpec(memory_space=pl.ANY)],
        out_specs=pl.BlockSpec(memory_space=pl.ANY),
        scratch_shapes=[pltpu.SemaphoreType.DMA(())],
        compiler_params=pltpu.CompilerParams(has_side_effects=True),
        # Pure memory traffic: read nbytes + write nbytes, zero compute.
        cost_estimate=pl.CostEstimate(
            flops=0, transcendentals=0, bytes_accessed=2 * nbytes
        ),
    )(x)


def encoder_forward(x, *args, materialize=False):
    """Pallas 'forward' for the base Encoder interface.

    The base class defines no computation, so by default this is the
    zero-cost identity: it returns `x` without launching any kernel
    (no HBM traffic at all).  The returned array aliases the input.

    Set `materialize=True` to force a fresh output buffer; this launches a
    single HBM->HBM DMA copy kernel (bandwidth-bound, no VMEM staging).

    Extra *args are accepted (matching the PyTorch signature
    `forward(self, X, *args)`) but unused, since the base class defines
    no semantics for them.
    """
    del args
    if not materialize:
        # Best "optimization": do not launch a kernel for an identity.
        return x
    return _materialize_copy(x)


if __name__ == "__main__":
    key = jax.random.PRNGKey(0)
    batch, seq, hidden = 2, 8, 32
    x = jax.random.normal(key, (batch, seq, hidden), dtype=jnp.float32)

    # Zero-cost path (the recommended one for the abstract Encoder).
    out_fast = encoder_forward(x)

    # Materialized path: exercises the single-DMA Pallas copy kernel.
    out_copy = encoder_forward(x, materialize=True)
    jax.block_until_ready(out_copy)

    # Sanity checks: the base Encoder has no defined transformation, so both
    # paths must be exact pass-throughs.
    assert out_fast.shape == x.shape and out_fast.dtype == x.dtype
    assert out_copy.shape == x.shape and out_copy.dtype == x.dtype
    assert bool(jnp.array_equal(out_fast, x))
    assert bool(jnp.array_equal(out_copy, x))

    print("KERNEL_OK")
</pallas_src>

<mosaic_0001>
module attributes {stable_mosaic.version = 11 : i64} {
  func.func @_dma_copy_kernel(%arg0: memref<2x8x32xf32, #tpu.memory_space<any>>, %arg1: memref<2x8x32xf32, #tpu.memory_space<any>>, %arg2: memref<!tpu.dma_semaphore, #tpu.memory_space<semaphore_mem>>) attributes {dimension_semantics = [], scalar_prefetch = 0 : i64, scratch_operands = 1 : i64, tpu.core_type = #tpu.core_type<tc>} {
    tpu.enqueue_dma source(%arg0 : memref<2x8x32xf32, #tpu.memory_space<any>>) target(%arg1 : memref<2x8x32xf32, #tpu.memory_space<any>>) target_semaphore(%arg2 : memref<!tpu.dma_semaphore, #tpu.memory_space<semaphore_mem>>)
    tpu.wait_dma2 semaphore(%arg2 : memref<!tpu.dma_semaphore, #tpu.memory_space<semaphore_mem>>) src(%arg0 : memref<2x8x32xf32, #tpu.memory_space<any>>) dst(%arg1 : memref<2x8x32xf32, #tpu.memory_space<any>>)
    return
  }
}

</mosaic_0001>

<llo_original>
// kernel: tpu_custom_call.1
$region0: #{tpu_custom_call.1}
  #allocation0 [shape = 'u32[]', space=smem, size = 0x4, offset = 0x4, fixed_abs, tag = 'smem constant byte address 0x4 - core index']
  #allocation1 [shape = 'u32[72,128]{1,0:T(1,128)}', space=vmem, size = 0x9000, scoped, tag = 'internal scratch']
  #allocation2 [shape = 's32[1]{0}', space=sflag, size = 0x4, scoped, tag = 'scratch operand']
  #allocation3 [shape = 's32[]', space=sflag, size = 0x4, offset = 0, fixed_abs, tag = 'sflag constant byte address 0x0 - dummy sync flag']
  #allocation4 [shape = 'u32[0]{0}', space=smem, size = 0, offset = 0, fixed_abs, tag = 'smem constant byte address 0x0 - null']
  %s0 = inlined_call_operand.hbm [shape: f32[2,8,32], index: 0, kind: input, shape index: {}]
  %s1 = inlined_call_operand.hbm [shape: f32[2,8,32], index: 1, kind: output, shape index: {}]
  %s2 = sld [smem:[#allocation0]]
  $region2: #{tpu_custom_call.1} parent=0
    _
  %s4 = ssub.s32 1, %s2
  %s5 = scalar_select 0, %s4, %s2
  %s7 = sshll.u32 1, 14
  %s8 = sxor.u32 4294967295, %s7
  %s10 = sshll.u32 %s0, 4
  %s11 = int_to_ptr.hbm [resolvable:$true] %s10
  %s12 = sshll.u32 %s1, 4
  %s13 = int_to_ptr.hbm [resolvable:$true] %s12
  %16 = dma.general %s11, 256, %s13, [#allocation2], [#allocation3], [#allocation4], 0, 0
  %s17 = smul.u32 2, 8
  %s18 = smul.u32 %s17, 1
  %s19 = sshll.u32 %s18, 4
  %20 = dma.done [#allocation2], %s19
  %21 = vsyncmov [#allocation2]
  %s22 = vpop.sfrf %21
  %p23 = scmp.eq.s32.totalorder %s22, 0
  %p24 = pneg %p23
  %26 = shalt.err (%p24)

</llo_original>
